<compile_context>
chip_gen: v5e
topology: v5e:2x2
jax: 0.10.0
libtpu: 0.0.40
codegen_flags: <defaults>
</compile_context>

<pallas_src>
import functools
import math

import jax
import jax.numpy as jnp
from jax.experimental import pallas as pl
from jax.experimental.pallas import tpu as pltpu

VMEM_SPEC = pl.BlockSpec(memory_space=pltpu.MemorySpace.VMEM)
_NEG_INF = -1e30


def _nbytes(x):
    return math.prod(x.shape) * jnp.dtype(x.dtype).itemsize


def _pcall(kernel, args, out_shape, scratch_shapes=()):
    """Single-block pallas_call: every operand lives fully in VMEM (demo shapes)."""
    resident = sum(_nbytes(a) for a in args) + _nbytes(out_shape)
    vmem_limit = int(min(max(2 * resident + (4 << 20), 32 << 20), 100 << 20))
    return pl.pallas_call(
        kernel,
        out_shape=out_shape,
        in_specs=[VMEM_SPEC] * len(args),
        out_specs=VMEM_SPEC,
        scratch_shapes=list(scratch_shapes),
        compiler_params=pltpu.CompilerParams(vmem_limit_bytes=vmem_limit),
    )(*args)


# ----------------------------- kernels --------------------------------------


def _edge_net_kernel(ef_ref, w1_ref, b1_ref, w2_ref, b2_ref, wenn_ref, benn_ref,
                     aflat_ref):
    # EdgeEncoderMLP (Linear -> ReLU -> Linear) followed by the edge-network
    # linear producing the flattened per-edge H*H matrices.  All MXU operands
    # are bf16; accumulation is f32; the lane-dense [E, H*H] output is stored
    # in bf16 (halves the HBM round trip to the MP kernel).
    h = jnp.dot(ef_ref[...], w1_ref[...], preferred_element_type=jnp.float32) + b1_ref[...]
    h = jnp.maximum(h, 0.0)
    ed = jnp.dot(h.astype(jnp.bfloat16), w2_ref[...],
                 preferred_element_type=jnp.float32) + b2_ref[...]
    aflat = jnp.dot(ed.astype(jnp.bfloat16), wenn_ref[...],
                    preferred_element_type=jnp.float32) + benn_ref[...]
    aflat_ref[...] = aflat.astype(jnp.bfloat16)


def _mp_kernel(nf_ref, win_ref, bin_ref, a3_ref, gsrc_ref, stgt_ref,
               wih_ref, whh_ref, bih_ref, bhh_ref, x_out_ref, *, mp_steps):
    # Fused: x = input_linear(node_features); then mp_steps iterations of
    #   hs  = x[Esrc]            (bf16 one-hot gather matmul, MXU)
    #   m_e = A_e @ hs_e         (per-edge matvec, f32 VPU mul + lane reduce)
    #   m   = scatter_add(Etgt)  (bf16 one-hot scatter matmul, MXU)
    #   x   = GRUCell(m, x)      (PyTorch gate order r, z, n; f32 gates)
    # Loop-invariant tensors (A3, gsrc, stgt, GRU weights) are intentionally
    # re-read from their VMEM refs every iteration so no vreg live range spans
    # the unrolled loop (avoids the spill-bound regime flagged in review).
    H = win_ref.shape[1]
    x = jnp.dot(nf_ref[...], win_ref[...], preferred_element_type=jnp.float32) + bin_ref[...]
    for _ in range(mp_steps):  # static unroll (mp_steps == 3)
        hs = jnp.dot(gsrc_ref[...], x.astype(jnp.bfloat16),
                     preferred_element_type=jnp.float32)                      # [E, H]
        # TODO(synk): transposed A_T[e,k,i] + sublane reduce would avoid one
        # relayout per step; kept the proven lane-reduce form for compile safety.
        m_e = jnp.sum(a3_ref[...].astype(jnp.float32) * hs[:, None, :], axis=-1)  # [E, H]
        m = jnp.dot(stgt_ref[...], m_e.astype(jnp.bfloat16),
                    preferred_element_type=jnp.float32)                       # [N, H]
        gi = jnp.dot(m.astype(jnp.bfloat16), wih_ref[...],
                     preferred_element_type=jnp.float32) + bih_ref[...]       # [N, 3H]
        gh = jnp.dot(x.astype(jnp.bfloat16), whh_ref[...],
                     preferred_element_type=jnp.float32) + bhh_ref[...]       # [N, 3H]
        r = jax.nn.sigmoid(gi[:, 0:H] + gh[:, 0:H])
        z = jax.nn.sigmoid(gi[:, H:2 * H] + gh[:, H:2 * H])
        n = jnp.tanh(gi[:, 2 * H:3 * H] + r * gh[:, 2 * H:3 * H])
        x = (1.0 - z) * n + z * x
    x_out_ref[...] = x


def _s2s_kernel(xb_ref, xt_ref, bias_ref, wlstm_ref, blstm_ref, wout_ref, bout_ref,
                out_ref, *, processing_steps):
    # Fused Set2Set readout + output linear.  (q, r, h, c) are register-carried
    # through an unrolled fori_loop (no scratch store->load per step).  The
    # LSTM gate GEMM is a single K=3H matmul on [q | r | h]; the attention is a
    # dense [B,N] score matmul + additive mask bias + masked-free softmax with
    # an approximate EUP reciprocal + a [B,N]x[N,H] readout matmul.
    H = xt_ref.shape[0]
    B = bias_ref.shape[0]

    def body(step, carry):
        q, r, h, c = carry
        # ---- LSTM cell (gate order i, f, g, o), fused gate matmul ----
        gate_in = jnp.concatenate([q, r, h], axis=-1).astype(jnp.bfloat16)    # [B, 3H]
        gates = jnp.dot(gate_in, wlstm_ref[...],
                        preferred_element_type=jnp.float32) + blstm_ref[...]  # [B, 4H]
        i_g = jax.nn.sigmoid(gates[:, 0:H])
        f_g = jax.nn.sigmoid(gates[:, H:2 * H])
        g_g = jnp.tanh(gates[:, 2 * H:3 * H])
        o_g = jax.nn.sigmoid(gates[:, 3 * H:4 * H])
        c_new = f_g * c + i_g * g_g
        h_new = o_g * jnp.tanh(c_new)
        q_new = h_new                                                          # [B, H]
        # ---- segment-softmax attention, dense [B, N] formulation ----
        scores = jnp.dot(q_new.astype(jnp.bfloat16), xt_ref[...],
                         preferred_element_type=jnp.float32) + bias_ref[...]   # [B, N]
        mmax = jnp.max(scores, axis=-1, keepdims=True)                         # [B, 1]
        p = jnp.exp(scores - mmax)                                             # masked -> 0
        denom = jnp.sum(p, axis=-1, keepdims=True)                             # [B, 1]
        inv = pl.reciprocal(jnp.maximum(denom, 1e-30), approx=True)            # EUP, guarded
        a = p * inv                                                            # [B, N]
        r_new = jnp.dot(a.astype(jnp.bfloat16), xb_ref[...],
                        preferred_element_type=jnp.float32)                    # [B, H]
        return (q_new, r_new, h_new, c_new)

    z = jnp.zeros((B, H), jnp.float32)
    q, r, h, c = jax.lax.fori_loop(0, processing_steps, body, (z, z, z, z),
                                   unroll=True)
    # model takes q_star[:, :H] == q of the last step, then the output linear
    out_ref[...] = (
        jnp.dot(q.astype(jnp.bfloat16), wout_ref[...],
                preferred_element_type=jnp.float32) + bout_ref[...]
    )


# ----------------------------- glue wrappers ---------------------------------


def edge_network(edge_features, p_ee1, p_ee2, p_enn):
    (w1, b1), (w2, b2), (wenn, benn) = p_ee1, p_ee2, p_enn
    E = edge_features.shape[0]
    HH = wenn.shape[0]
    bf = jnp.bfloat16
    return _pcall(
        _edge_net_kernel,
        (edge_features.astype(bf), w1.T.astype(bf), b1.reshape(1, -1),
         w2.T.astype(bf), b2.reshape(1, -1), wenn.T.astype(bf), benn.reshape(1, -1)),
        jax.ShapeDtypeStruct((E, HH), jnp.bfloat16),
    )


def message_passing(node_features, A3, gather_src, scatter_tgt, p_in, p_gru, mp_steps):
    w_in, b_in = p_in
    w_ih, w_hh, b_ih, b_hh = p_gru
    N = node_features.shape[0]
    H = w_in.shape[0]
    bf = jnp.bfloat16
    kernel = functools.partial(_mp_kernel, mp_steps=mp_steps)
    return _pcall(
        kernel,
        (node_features.astype(bf), w_in.T.astype(bf), b_in.reshape(1, -1),
         A3, gather_src, scatter_tgt,
         w_ih.T.astype(bf), w_hh.T.astype(bf),
         b_ih.reshape(1, -1), b_hh.reshape(1, -1)),
        jax.ShapeDtypeStruct((N, H), jnp.float32),
    )


def set2set_readout(x, mask_bias, p_lstm, p_out, processing_steps):
    w_ih, w_hh, b_ih, b_hh = p_lstm
    w_out, b_out = p_out
    B = mask_bias.shape[0]
    bf = jnp.bfloat16
    # Concatenated [3H, 4H] gate weight (built once in glue): rows [q | r | h].
    wlstm = jnp.concatenate([w_ih.T, w_hh.T], axis=0).astype(bf)
    blstm = (b_ih + b_hh).reshape(1, -1)                   # [1, 4H] f32
    kernel = functools.partial(_s2s_kernel, processing_steps=processing_steps)
    return _pcall(
        kernel,
        (x.astype(bf), x.T.astype(bf), mask_bias, wlstm, blstm,
         w_out.T.astype(bf), b_out.reshape(1, -1)),
        jax.ShapeDtypeStruct((B, w_out.shape[0]), jnp.float32),
    )


# ----------------------------- parameters ------------------------------------


def _init_linear(key, fan_in, fan_out):
    k1, k2 = jax.random.split(key)
    bound = 1.0 / float(fan_in) ** 0.5
    w = jax.random.uniform(k1, (fan_out, fan_in), jnp.float32, -bound, bound)
    b = jax.random.uniform(k2, (fan_out,), jnp.float32, -bound, bound)
    return w, b


def init_params(key, node_features, edge_features, hidden, out_features):
    keys = jax.random.split(key, 13)
    H = hidden
    params = {}
    params["input"] = _init_linear(keys[0], node_features, H)
    params["ee1"] = _init_linear(keys[1], edge_features, H)
    params["ee2"] = _init_linear(keys[2], H, H)
    params["enn"] = _init_linear(keys[3], H, H * H)               # edge net -> HxH matrices
    params["gru"] = (_init_linear(keys[4], H, 3 * H)[0],          # w_ih [3H, H]
                     _init_linear(keys[5], H, 3 * H)[0],          # w_hh [3H, H]
                     _init_linear(keys[6], H, 3 * H)[1],          # b_ih [3H]
                     _init_linear(keys[7], H, 3 * H)[1])          # b_hh [3H]
    params["lstm"] = (_init_linear(keys[8], 2 * H, 4 * H)[0],     # w_ih [4H, 2H]
                      _init_linear(keys[9], H, 4 * H)[0],         # w_hh [4H, H]
                      _init_linear(keys[10], 2 * H, 4 * H)[1],    # b_ih [4H]
                      _init_linear(keys[11], H, 4 * H)[1])        # b_hh [4H]
    params["output"] = _init_linear(keys[12], H, out_features)
    return params


# ----------------------------- forward ---------------------------------------


def mpnn_enn_set2set_forward(params, node_features, edge_features, Esrc, Etgt, batch,
                             batch_size, processing_steps=12, mp_steps=3,
                             out_type="regression"):
    E = edge_features.shape[0]
    N = node_features.shape[0]
    H = params["input"][0].shape[0]
    bf = jnp.bfloat16

    # Dense one-hot gather/scatter matrices in bf16 (exactly representable).
    # TODO(synk): for N or E beyond ~1-2k switch to scalar-prefetched Esrc/Etgt
    # (PrefetchScalarGridSpec, SMEM) + VMEM scatter-accumulation instead.
    gather_src = jax.nn.one_hot(Esrc, N, dtype=bf)                       # [E, N]
    scatter_tgt = jax.nn.one_hot(Etgt, N, dtype=bf).T                    # [N, E]
    # Additive attention-mask bias: 0 for own-graph nodes, -1e30 otherwise.
    mask_bias = jnp.where(batch[None, :] == jnp.arange(batch_size)[:, None],
                          0.0, _NEG_INF).astype(jnp.float32)             # [B, N]

    # edge_data = self.ee(edge_features); edge network -> per-edge HxH matrices (bf16)
    a_flat = edge_network(edge_features, params["ee1"], params["ee2"], params["enn"])
    A3 = a_flat.reshape(E, H, H)      # reshape in XLA glue, never inside a kernel

    # x = self.input(x); x = self.mpnn(x, Esrc, Etgt, edge_data)  -- fused kernel
    x = message_passing(node_features, A3, gather_src, scatter_tgt,
                        params["input"], params["gru"], mp_steps)

    # x = self.s2s(x, batch)[:, :H]; x = self.output(x)  -- fused kernel
    out = set2set_readout(x, mask_bias, params["lstm"], params["output"],
                          processing_steps)
    if out_type == "classification":
        out = jax.nn.log_softmax(out, axis=1)
    return out


# ----------------------------- demo ------------------------------------------

if __name__ == "__main__":
    NODE_F, EDGE_F, HIDDEN, OUT_F = 4, 3, 32, 2
    N, E = 16, 32

    key = jax.random.PRNGKey(0)
    k_param, k_node, k_edge, k_src, k_tgt = jax.random.split(key, 5)

    params = init_params(k_param, NODE_F, EDGE_F, HIDDEN, OUT_F)
    node_feat = jax.random.normal(k_node, (N, NODE_F), jnp.float32)
    edge_feat = jax.random.normal(k_edge, (E, EDGE_F), jnp.float32)
    Esrc = jax.random.randint(k_src, (E,), 0, N, dtype=jnp.int32)
    Etgt = jax.random.randint(k_tgt, (E,), 0, N, dtype=jnp.int32)
    batch = jnp.concatenate([jnp.zeros((N // 2,), jnp.int32),
                             jnp.ones((N - N // 2,), jnp.int32)])  # 2 graphs

    batch_size = int(batch.max()) + 1   # static, computed outside any traced code

    out = mpnn_enn_set2set_forward(params, node_feat, edge_feat, Esrc, Etgt, batch,
                                   batch_size)
    out = jax.block_until_ready(out)

    assert out.shape == (batch_size, OUT_F), out.shape
    assert bool(jnp.all(jnp.isfinite(out)))
    print("KERNEL_OK")
</pallas_src>

<mosaic_0001>
module attributes {stable_mosaic.version = 11 : i64} {
  func.func @_edge_net_kernel(%arg0: memref<32x3xbf16, #tpu.memory_space<vmem>>, %arg1: memref<3x32xbf16, #tpu.memory_space<vmem>>, %arg2: memref<1x32xf32, #tpu.memory_space<vmem>>, %arg3: memref<32x32xbf16, #tpu.memory_space<vmem>>, %arg4: memref<1x32xf32, #tpu.memory_space<vmem>>, %arg5: memref<32x1024xbf16, #tpu.memory_space<vmem>>, %arg6: memref<1x1024xf32, #tpu.memory_space<vmem>>, %arg7: memref<32x1024xbf16, #tpu.memory_space<vmem>>) attributes {dimension_semantics = [], scalar_prefetch = 0 : i64, scratch_operands = 0 : i64, tpu.core_type = #tpu.core_type<tc>} {
    %c0 = arith.constant 0 : index
    %c0_0 = arith.constant 0 : index
    %0 = vector.load %arg0[%c0, %c0_0] : memref<32x3xbf16, #tpu.memory_space<vmem>>, vector<32x3xbf16>
    %c0_1 = arith.constant 0 : index
    %c0_2 = arith.constant 0 : index
    %1 = vector.load %arg1[%c0_1, %c0_2] : memref<3x32xbf16, #tpu.memory_space<vmem>>, vector<3x32xbf16>
    %cst = arith.constant dense<0.000000e+00> : vector<32x32xf32>
    %2 = tpu.matmul %0, %1, %cst {dimension_numbers = #tpu.dot_dimension_numbers<[1], [0], [0], [1], [0, 0, 1, 1], [], []>} : vector<32x3xbf16>, vector<3x32xbf16>, vector<32x32xf32> -> vector<32x32xf32>
    %c0_3 = arith.constant 0 : index
    %c0_4 = arith.constant 0 : index
    %3 = vector.load %arg2[%c0_3, %c0_4] : memref<1x32xf32, #tpu.memory_space<vmem>>, vector<1x32xf32>
    %4 = vector.broadcast %3 : vector<1x32xf32> to vector<32x32xf32>
    %5 = arith.addf %2, %4 : vector<32x32xf32>
    %cst_5 = arith.constant 0.000000e+00 : f32
    %6 = vector.broadcast %cst_5 : f32 to vector<32x32xf32>
    %7 = arith.maximumf %5, %6 : vector<32x32xf32>
    %8 = arith.truncf %7 : vector<32x32xf32> to vector<32x32xbf16>
    %c0_6 = arith.constant 0 : index
    %c0_7 = arith.constant 0 : index
    %9 = vector.load %arg3[%c0_6, %c0_7] : memref<32x32xbf16, #tpu.memory_space<vmem>>, vector<32x32xbf16>
    %cst_8 = arith.constant dense<0.000000e+00> : vector<32x32xf32>
    %10 = tpu.matmul %8, %9, %cst_8 {dimension_numbers = #tpu.dot_dimension_numbers<[1], [0], [0], [1], [0, 0, 1, 1], [], []>} : vector<32x32xbf16>, vector<32x32xbf16>, vector<32x32xf32> -> vector<32x32xf32>
    %c0_9 = arith.constant 0 : index
    %c0_10 = arith.constant 0 : index
    %11 = vector.load %arg4[%c0_9, %c0_10] : memref<1x32xf32, #tpu.memory_space<vmem>>, vector<1x32xf32>
    %12 = vector.broadcast %11 : vector<1x32xf32> to vector<32x32xf32>
    %13 = arith.addf %10, %12 : vector<32x32xf32>
    %14 = arith.truncf %13 : vector<32x32xf32> to vector<32x32xbf16>
    %c0_11 = arith.constant 0 : index
    %c0_12 = arith.constant 0 : index
    %15 = vector.load %arg5[%c0_11, %c0_12] : memref<32x1024xbf16, #tpu.memory_space<vmem>>, vector<32x1024xbf16>
    %cst_13 = arith.constant dense<0.000000e+00> : vector<32x1024xf32>
    %16 = tpu.matmul %14, %15, %cst_13 {dimension_numbers = #tpu.dot_dimension_numbers<[1], [0], [0], [1], [0, 0, 1, 1], [], []>} : vector<32x32xbf16>, vector<32x1024xbf16>, vector<32x1024xf32> -> vector<32x1024xf32>
    %c0_14 = arith.constant 0 : index
    %c0_15 = arith.constant 0 : index
    %17 = vector.load %arg6[%c0_14, %c0_15] : memref<1x1024xf32, #tpu.memory_space<vmem>>, vector<1x1024xf32>
    %18 = vector.broadcast %17 : vector<1x1024xf32> to vector<32x1024xf32>
    %19 = arith.addf %16, %18 : vector<32x1024xf32>
    %20 = arith.truncf %19 : vector<32x1024xf32> to vector<32x1024xbf16>
    %c0_16 = arith.constant 0 : index
    %c0_17 = arith.constant 0 : index
    %21 = vector.load %arg7[%c0_16, %c0_17] : memref<32x1024xbf16, #tpu.memory_space<vmem>>, vector<32x1024xbf16>
    tpu.vector_store %arg7[%c0_16, %c0_17], %20 {strides = array<i32>} : memref<32x1024xbf16, #tpu.memory_space<vmem>>, vector<32x1024xbf16>,
    return
  }
}

</mosaic_0001>

<llo_original>
// kernel: tpu_custom_call.1
$region0: #{tpu_custom_call.1}
  #allocation0 [shape = 'u32[]', space=smem, size = 0x4, offset = 0x4, fixed_abs, tag = 'smem constant byte address 0x4 - core index']
  #allocation1 [shape = 'u32[72,128]{1,0:T(1,128)}', space=vmem, size = 0x9000, scoped, tag = 'internal scratch']
  %s0 = inlined_call_operand.vmem [shape: bf16[32,3], index: 0, kind: input, shape index: {}]
  %s1 = inlined_call_operand.vmem [shape: bf16[3,32], index: 1, kind: input, shape index: {}]
  %s2 = inlined_call_operand.vmem [shape: f32[1,32], index: 2, kind: input, shape index: {}]
  %s3 = inlined_call_operand.vmem [shape: bf16[32,32], index: 3, kind: input, shape index: {}]
  %s4 = inlined_call_operand.vmem [shape: f32[1,32], index: 4, kind: input, shape index: {}]
  %s5 = inlined_call_operand.hbm [shape: bf16[32,1024], index: 5, kind: input, shape index: {}]
  %s6 = inlined_call_operand.hbm [shape: f32[1,1024], index: 6, kind: input, shape index: {}]
  %s7 = inlined_call_operand.hbm [shape: bf16[32,1024], index: 7, kind: output, shape index: {}]
  %s8 = sld [smem:[#allocation0]]
  $region46: #{tpu_custom_call.1} parent=0
    _
  %s10 = ssub.s32 1, %s8
  %s11 = scalar_select 0, %s10, %s8
  $region1: #{tpu_custom_call.1} parent=0
    #allocation2 [shape = 'u8[65536]{0}', space=vmem, size = 0x10000, scoped, tag = 'input window, operand 5, single buffered']
    #allocation3 [shape = 's32[1]{0}', space=sflag, size = 0x4, scoped, tag = 'scoped memory for tpu_custom_call.1']
    #allocation4 [shape = 's32[1]{0}', space=sflag, size = 0x4, scoped, tag = 'scoped memory for tpu_custom_call.1']
    #allocation5 [shape = 'u8[4096]{0}', space=vmem, size = 0x1000, scoped, tag = 'input window, operand 6, single buffered']
    #allocation6 [shape = 's32[1]{0}', space=sflag, size = 0x4, scoped, tag = 'scoped memory for tpu_custom_call.1']
    #allocation7 [shape = 'u8[65536]{0}', space=vmem, size = 0x10000, scoped, tag = 'output window, operand 0, single buffered']
    %12 = vsyncpa [#allocation3], 0
    %13 = vsyncpa [#allocation6], 0
    %14 = vsyncpa [#allocation4], 0
    // Predicated region
    $region2: #{tpu_custom_call.1} parent=1 // pred_check
      _
    $region3: #{tpu_custom_call.1} parent=1 // pred_check_branch
      %16 = sbr.rel (0) target = $region5
    $region4: #{tpu_custom_call.1} parent=1 // pred_region
      _
    $region5: #{tpu_custom_call.1} parent=1 // pred_fallthru
      _
    // Predicated region
    $region6: #{tpu_custom_call.1} parent=1 // pred_check
      _
    $region7: #{tpu_custom_call.1} parent=1 // pred_check_branch
      %18 = sbr.rel (0) target = $region9
    $region8: #{tpu_custom_call.1} parent=1 // pred_region
      _
    $region9: #{tpu_custom_call.1} parent=1 // pred_fallthru
      _
    // Predicated region
    $region10: #{tpu_custom_call.1} parent=1 // pred_check
      _
    $region11: #{tpu_custom_call.1} parent=1 // pred_check_branch
      %20 = sbr.rel (0) target = $region13
    $region12: #{tpu_custom_call.1} parent=1 // pred_region
      _
    $region13: #{tpu_custom_call.1} parent=1 // pred_fallthru
      _
    // Predicated region
    $region14: #{tpu_custom_call.1} parent=1 // pred_check
      _
    $region15: #{tpu_custom_call.1} parent=1 // pred_check_branch
      %22 = sbr.rel (0) target = $region17
    $region16: #{tpu_custom_call.1} parent=1 // pred_region
      _
    $region17: #{tpu_custom_call.1} parent=1 // pred_fallthru
      _
    // Predicated region
    $region18: #{tpu_custom_call.1} parent=1 // pred_check
      _
    $region19: #{tpu_custom_call.1} parent=1 // pred_check_branch
      %24 = sbr.rel (0) target = $region21
    $region20: #{tpu_custom_call.1} parent=1 // pred_region
      _
    $region21: #{tpu_custom_call.1} parent=1 // pred_fallthru
      _
    // Predicated region
    $region22: #{tpu_custom_call.1} parent=1 // pred_check
      _
    $region23: #{tpu_custom_call.1} parent=1 // pred_check_branch
      %26 = sbr.rel (0) target = $region25
    $region24: #{tpu_custom_call.1} parent=1 // pred_region
      %28 = vsyncadd [#allocation3], 0
      %s29 = sshll.u32 %s5, 4
      %s30 = int_to_ptr.hbm [resolvable:$true] %s29
      %s31 = sshll.u32 [#allocation2], 4
      %s32 = int_to_ptr.vmem [resolvable:$true] %s31
      %37 = dma.hbm_to_vmem [thread:$0]  %s30, 2048, %s32, [#allocation3], 512, 512, 32
    $region25: #{tpu_custom_call.1} parent=1 // pred_fallthru
      _
    // Predicated region
    $region26: #{tpu_custom_call.1} parent=1 // pred_check
      _
    $region27: #{tpu_custom_call.1} parent=1 // pred_check_branch
      %39 = sbr.rel (0) target = $region29
    $region28: #{tpu_custom_call.1} parent=1 // pred_region
      %41 = vsyncadd [#allocation6], 0
      %s43 = sshll.u32 %s6, 4
      %s44 = int_to_ptr.hbm [resolvable:$true] %s43
      %s45 = sshll.u32 [#allocation5], 4
      %s46 = int_to_ptr.vmem [resolvable:$true] %s45
      %48 = dma.hbm_to_vmem [thread:$0]  %s44, 128, %s46, [#allocation6]
    $region29: #{tpu_custom_call.1} parent=1 // pred_fallthru
      _
    // Predicated region
    $region30: #{tpu_custom_call.1} parent=1 // pred_check
      _
    $region31: #{tpu_custom_call.1} parent=1 // pred_check_branch
      %50 = sbr.rel (0) target = $region33
    $region32: #{tpu_custom_call.1} parent=1 // pred_region
      %52 = dma.done [#allocation3], 2048
    $region33: #{tpu_custom_call.1} parent=1 // pred_fallthru
      _
    // Predicated region
    $region34: #{tpu_custom_call.1} parent=1 // pred_check
      _
    $region35: #{tpu_custom_call.1} parent=1 // pred_check_branch
      %54 = sbr.rel (0) target = $region37
    $region36: #{tpu_custom_call.1} parent=1 // pred_region
      %56 = dma.done [#allocation6], 128
    $region37: #{tpu_custom_call.1} parent=1 // pred_fallthru
      _
    %v58 = vld [vmem:[%s0] sm:$0xf]
    %v59 = vld [vmem:[%s0 + $0x4] sm:$0xf]
    %v60 = vld [vmem:[%s0 + $0x8] sm:$0xf]
    %v61 = vld [vmem:[%s0 + $0xc] sm:$0xf]
    %v62 = vld [vmem:[%s1] sm:$0x3]
    %v63 = vld [vmem:[%s2] sm:$0x1]
    %v65 = vperm.slane %v63, 0
    %v71 = vunpack.c.l.b16 %v58
    %v72 = vunpack.c.l.b16 %v59
    %v73 = vunpack.c.l.b16 %v60
    %v74 = vunpack.c.l.b16 %v61
    %v75 = vpack.c.b16 %v72, %v71
    %v76 = vpack.c.b16 %v74, %v73
    %vm77 = vcmask 23552
    %v79 = vsel %vm77, %v75, 0
    %v82 = vsel %vm77, %v76, 0
    %vm84 = vcmask 1040384
    %vm85 = vcmask 1041408
    %v86 = vsel %vm84, 4294967295, 65535
    %v87 = vsel %vm85, %v86, 0
    %v89 = vand.u32 %v62, %v87
    %91 = vmatpush.bf16.msra.mxu0 0
    %92 = vmatpush.bf16.msra.mxu0 0
    %93 = vmatpush.bf16.msra.mxu0 0
    %94 = vmatpush.bf16.msra.mxu0 0
    %95 = vmatpush.bf16.msra.mxu0 0
    %96 = vmatpush.bf16.msra.mxu0 0
    %97 = vmatpush.bf16.msra.mxu0 0
    %98 = vmatpush.bf16.msra.mxu0 %v89
    %99 = vmatmul.bf16.gmra.mxu0 %v79
    %v100 = vpop.f32.mrf.mxu0
    %v101 = vadd.f32 %v65, %v100
    %v102 = vpop.f32.mrf.mxu0
    %v103 = vadd.f32 %v65, %v102
    %104 = vmatmul.bf16.gmra.mxu0 %v82
    %v105 = vpop.f32.mrf.mxu0
    %v106 = vadd.f32 %v65, %v105
    %v107 = vpop.f32.mrf.mxu0
    %v108 = vadd.f32 %v65, %v107
    %109 = vdwg.mxu0
    %v110 = vmax.f32 %v101, 0.0
    %v111 = vmax.f32 %v103, 0.0
    %v112 = vmax.f32 %v106, 0.0
    %v113 = vmax.f32 %v108, 0.0
    %v114 = vpack.c.bf16 %v111, %v110
    %v115 = vpack.c.bf16 %v113, %v112
    %v116 = vld [vmem:[%s3] sm:$0xf]
    %v117 = vld [vmem:[%s3 + $0x4] sm:$0xf]
    %v118 = vld [vmem:[%s3 + $0x8] sm:$0xf]
    %v119 = vld [vmem:[%s3 + $0xc] sm:$0xf]
    %v120 = vld [vmem:[%s4] sm:$0x1]
    %v122 = vperm.slane %v120, 0
    %v128 = vunpack.c.l.b16 %v116
    %v129 = vunpack.c.l.b16 %v117
    %v130 = vunpack.c.l.b16 %v118
    %v131 = vunpack.c.l.b16 %v119
    %v132 = vpack.c.b16 %v129, %v128
    %v133 = vpack.c.b16 %v131, %v130
    %vm136 = vcmask 261120
    %v138 = vsel %vm136, %v114, 0
    %v141 = vsel %vm136, %v115, 0
    %143 = vmatpush.bf16.msra.mxu0 0
    %144 = vmatpush.bf16.msra.mxu0 0
    %145 = vmatpush.bf16.msra.mxu0 0
    %146 = vmatpush.bf16.msra.mxu0 0
    %147 = vmatpush.bf16.msra.mxu0 0
    %148 = vmatpush.bf16.msra.mxu0 0
    %149 = vmatpush.bf16.msra.mxu0 %v133
    %150 = vmatpush.bf16.msra.mxu0 %v132
    %151 = vmatmul.bf16.gmra.mxu0 %v138
    %v152 = vpop.f32.mrf.mxu0
    %v153 = vadd.f32 %v122, %v152
    %v154 = vpop.f32.mrf.mxu0
    %v155 = vadd.f32 %v122, %v154
    %156 = vmatmul.bf16.gmra.mxu0 %v141
    %v157 = vpop.f32.mrf.mxu0
    %v158 = vadd.f32 %v122, %v157
    %v159 = vpop.f32.mrf.mxu0
    %v160 = vadd.f32 %v122, %v159
    %161 = vdwg.mxu0
    %v162 = vpack.c.bf16 %v155, %v153
    %v163 = vpack.c.bf16 %v160, %v158
    %v164 = vld [vmem:[#allocation2] sm:$0xff]
    %v165 = vld [vmem:[#allocation2 + $0x8] sm:$0xff]
    %v166 = vld [vmem:[#allocation2 + $0x10] sm:$0xff]
    %v167 = vld [vmem:[#allocation2 + $0x18] sm:$0xff]
    %v168 = vld [vmem:[#allocation2 + $0x20] sm:$0xff]
    %v169 = vld [vmem:[#allocation2 + $0x28] sm:$0xff]
    %v170 = vld [vmem:[#allocation2 + $0x30] sm:$0xff]
    %v171 = vld [vmem:[#allocation2 + $0x38] sm:$0xff]
    %v172 = vld [vmem:[#allocation2 + $0x40] sm:$0xff]
    %v173 = vld [vmem:[#allocation2 + $0x48] sm:$0xff]
    %v174 = vld [vmem:[#allocation2 + $0x50] sm:$0xff]
    %v175 = vld [vmem:[#allocation2 + $0x58] sm:$0xff]
    %v176 = vld [vmem:[#allocation2 + $0x60] sm:$0xff]
    %v177 = vld [vmem:[#allocation2 + $0x68] sm:$0xff]
    %v178 = vld [vmem:[#allocation2 + $0x70] sm:$0xff]
    %v179 = vld [vmem:[#allocation2 + $0x78] sm:$0xff]
    %v180 = vld [vmem:[#allocation5] sm:$0xff]
    %v182 = vperm.slane %v180, 0
    %v183 = vperm.slane %v180, 1
    %v184 = vperm.slane %v180, 2
    %v185 = vperm.slane %v180, 3
    %v186 = vperm.slane %v180, 4
    %v187 = vperm.slane %v180, 5
    %v188 = vperm.slane %v180, 6
    %v189 = vperm.slane %v180, 7
    %v214 = vunpack.c.l.b16 %v164
    %v215 = vunpack.c.h.b16 %v164
    %v216 = vunpack.c.l.b16 %v165
    %v217 = vunpack.c.h.b16 %v165
    %v218 = vunpack.c.l.b16 %v166
    %v219 = vunpack.c.h.b16 %v166
    %v220 = vunpack.c.l.b16 %v167
    %v221 = vunpack.c.h.b16 %v167
    %v222 = vunpack.c.l.b16 %v168
    %v223 = vunpack.c.h.b16 %v168
    %v224 = vunpack.c.l.b16 %v169
    %v225 = vunpack.c.h.b16 %v169
    %v226 = vunpack.c.l.b16 %v170
    %v227 = vunpack.c.h.b16 %v170
    %v228 = vunpack.c.l.b16 %v171
    %v229 = vunpack.c.h.b16 %v171
    %v230 = vunpack.c.l.b16 %v172
    %v231 = vunpack.c.h.b16 %v172
    %v232 = vunpack.c.l.b16 %v173
    %v233 = vunpack.c.h.b16 %v173
    %v234 = vunpack.c.l.b16 %v174
    %v235 = vunpack.c.h.b16 %v174
    %v236 = vunpack.c.l.b16 %v175
    %v237 = vunpack.c.h.b16 %v175
    %v238 = vunpack.c.l.b16 %v176
    %v239 = vunpack.c.h.b16 %v176
    %v240 = vunpack.c.l.b16 %v177
    %v241 = vunpack.c.h.b16 %v177
    %v242 = vunpack.c.l.b16 %v178
    %v243 = vunpack.c.h.b16 %v178
    %v244 = vunpack.c.l.b16 %v179
    %v245 = vunpack.c.h.b16 %v179
    %v246 = vpack.c.b16 %v222, %v214
    %v247 = vpack.c.b16 %v223, %v215
    %v248 = vpack.c.b16 %v224, %v216
    %v249 = vpack.c.b16 %v225, %v217
    %v250 = vpack.c.b16 %v226, %v218
    %v251 = vpack.c.b16 %v227, %v219
    %v252 = vpack.c.b16 %v228, %v220
    %v253 = vpack.c.b16 %v229, %v221
    %v254 = vpack.c.b16 %v238, %v230
    %v255 = vpack.c.b16 %v239, %v231
    %v256 = vpack.c.b16 %v240, %v232
    %v257 = vpack.c.b16 %v241, %v233
    %v258 = vpack.c.b16 %v242, %v234
    %v259 = vpack.c.b16 %v243, %v235
    %v260 = vpack.c.b16 %v244, %v236
    %v261 = vpack.c.b16 %v245, %v237
    %v279 = vsel %vm136, %v162, 0
    %v282 = vsel %vm136, %v163, 0
    %284 = vmatpush.bf16.msra.mxu0 0
    %285 = vmatpush.bf16.msra.mxu0 0
    %286 = vmatpush.bf16.msra.mxu0 0
    %287 = vmatpush.bf16.msra.mxu0 0
    %288 = vmatpush.bf16.msra.mxu0 0
    %289 = vmatpush.bf16.msra.mxu0 0
    %290 = vmatpush.bf16.msra.mxu0 %v254
    %291 = vmatpush.bf16.msra.mxu0 %v246
    %292 = vmatmul.bf16.gmra.mxu0 %v279
    %v293 = vpop.f32.mrf.mxu0
    %v294 = vadd.f32 %v182, %v293
    %v295 = vpop.f32.mrf.mxu0
    %v296 = vadd.f32 %v182, %v295
    %297 = vmatmul.bf16.gmra.mxu0 %v282
    %v298 = vpop.f32.mrf.mxu0
    %v299 = vadd.f32 %v182, %v298
    %v300 = vpop.f32.mrf.mxu0
    %v301 = vadd.f32 %v182, %v300
    %302 = vdwg.mxu0
    %303 = vmatpush.bf16.msra.mxu0 0
    %304 = vmatpush.bf16.msra.mxu0 0
    %305 = vmatpush.bf16.msra.mxu0 0
    %306 = vmatpush.bf16.msra.mxu0 0
    %307 = vmatpush.bf16.msra.mxu0 0
    %308 = vmatpush.bf16.msra.mxu0 0
    %309 = vmatpush.bf16.msra.mxu0 %v255
    %310 = vmatpush.bf16.msra.mxu0 %v247
    %311 = vmatmul.bf16.gmra.mxu0 %v279
    %v312 = vpop.f32.mrf.mxu0
    %v313 = vadd.f32 %v183, %v312
    %v314 = vpop.f32.mrf.mxu0
    %v315 = vadd.f32 %v183, %v314
    %316 = vmatmul.bf16.gmra.mxu0 %v282
    %v317 = vpop.f32.mrf.mxu0
    %v318 = vadd.f32 %v183, %v317
    %v319 = vpop.f32.mrf.mxu0
    %v320 = vadd.f32 %v183, %v319
    %321 = vdwg.mxu0
    %322 = vmatpush.bf16.msra.mxu0 0
    %323 = vmatpush.bf16.msra.mxu0 0
    %324 = vmatpush.bf16.msra.mxu0 0
    %325 = vmatpush.bf16.msra.mxu0 0
    %326 = vmatpush.bf16.msra.mxu0 0
    %327 = vmatpush.bf16.msra.mxu0 0
    %328 = vmatpush.bf16.msra.mxu0 %v256
    %329 = vmatpush.bf16.msra.mxu0 %v248
    %330 = vmatmul.bf16.gmra.mxu0 %v279
    %v331 = vpop.f32.mrf.mxu0
    %v332 = vadd.f32 %v184, %v331
    %v333 = vpop.f32.mrf.mxu0
    %v334 = vadd.f32 %v184, %v333
    %335 = vmatmul.bf16.gmra.mxu0 %v282
    %v336 = vpop.f32.mrf.mxu0
    %v337 = vadd.f32 %v184, %v336
    %v338 = vpop.f32.mrf.mxu0
    %v339 = vadd.f32 %v184, %v338
    %340 = vdwg.mxu0
    %341 = vmatpush.bf16.msra.mxu0 0
    %342 = vmatpush.bf16.msra.mxu0 0
    %343 = vmatpush.bf16.msra.mxu0 0
    %344 = vmatpush.bf16.msra.mxu0 0
    %345 = vmatpush.bf16.msra.mxu0 0
    %346 = vmatpush.bf16.msra.mxu0 0
    %347 = vmatpush.bf16.msra.mxu0 %v257
    %348 = vmatpush.bf16.msra.mxu0 %v249
    %349 = vmatmul.bf16.gmra.mxu0 %v279
    %v350 = vpop.f32.mrf.mxu0
    %v351 = vadd.f32 %v185, %v350
    %v352 = vpop.f32.mrf.mxu0
    %v353 = vadd.f32 %v185, %v352
    %354 = vmatmul.bf16.gmra.mxu0 %v282
    %v355 = vpop.f32.mrf.mxu0
    %v356 = vadd.f32 %v185, %v355
    %v357 = vpop.f32.mrf.mxu0
    %v358 = vadd.f32 %v185, %v357
    %359 = vdwg.mxu0
    %360 = vmatpush.bf16.msra.mxu0 0
    %361 = vmatpush.bf16.msra.mxu0 0
    %362 = vmatpush.bf16.msra.mxu0 0
    %363 = vmatpush.bf16.msra.mxu0 0
    %364 = vmatpush.bf16.msra.mxu0 0
    %365 = vmatpush.bf16.msra.mxu0 0
    %366 = vmatpush.bf16.msra.mxu0 %v258
    %367 = vmatpush.bf16.msra.mxu0 %v250
    %368 = vmatmul.bf16.gmra.mxu0 %v279
    %v369 = vpop.f32.mrf.mxu0
    %v370 = vadd.f32 %v186, %v369
    %v371 = vpop.f32.mrf.mxu0
    %v372 = vadd.f32 %v186, %v371
    %373 = vmatmul.bf16.gmra.mxu0 %v282
    %v374 = vpop.f32.mrf.mxu0
    %v375 = vadd.f32 %v186, %v374
    %v376 = vpop.f32.mrf.mxu0
    %v377 = vadd.f32 %v186, %v376
    %378 = vdwg.mxu0
    %379 = vmatpush.bf16.msra.mxu0 0
    %380 = vmatpush.bf16.msra.mxu0 0
    %381 = vmatpush.bf16.msra.mxu0 0
    %382 = vmatpush.bf16.msra.mxu0 0
    %383 = vmatpush.bf16.msra.mxu0 0
    %384 = vmatpush.bf16.msra.mxu0 0
    %385 = vmatpush.bf16.msra.mxu0 %v259
    %386 = vmatpush.bf16.msra.mxu0 %v251
    %387 = vmatmul.bf16.gmra.mxu0 %v279
    %v388 = vpop.f32.mrf.mxu0
    %v389 = vadd.f32 %v187, %v388
    %v390 = vpop.f32.mrf.mxu0
    %v391 = vadd.f32 %v187, %v390
    %392 = vmatmul.bf16.gmra.mxu0 %v282
    %v393 = vpop.f32.mrf.mxu0
    %v394 = vadd.f32 %v187, %v393
    %v395 = vpop.f32.mrf.mxu0
    %v396 = vadd.f32 %v187, %v395
    %397 = vdwg.mxu0
    %398 = vmatpush.bf16.msra.mxu0 0
    %399 = vmatpush.bf16.msra.mxu0 0
    %400 = vmatpush.bf16.msra.mxu0 0
    %401 = vmatpush.bf16.msra.mxu0 0
    %402 = vmatpush.bf16.msra.mxu0 0
    %403 = vmatpush.bf16.msra.mxu0 0
    %404 = vmatpush.bf16.msra.mxu0 %v260
    %405 = vmatpush.bf16.msra.mxu0 %v252
    %406 = vmatmul.bf16.gmra.mxu0 %v279
    %v407 = vpop.f32.mrf.mxu0
    %v408 = vadd.f32 %v188, %v407
    %v409 = vpop.f32.mrf.mxu0
    %v410 = vadd.f32 %v188, %v409
    %411 = vmatmul.bf16.gmra.mxu0 %v282
    %v412 = vpop.f32.mrf.mxu0
    %v413 = vadd.f32 %v188, %v412
    %v414 = vpop.f32.mrf.mxu0
    %v415 = vadd.f32 %v188, %v414
    %416 = vdwg.mxu0
    %417 = vmatpush.bf16.msra.mxu0 0
    %418 = vmatpush.bf16.msra.mxu0 0
    %419 = vmatpush.bf16.msra.mxu0 0
    %420 = vmatpush.bf16.msra.mxu0 0
    %421 = vmatpush.bf16.msra.mxu0 0
    %422 = vmatpush.bf16.msra.mxu0 0
    %423 = vmatpush.bf16.msra.mxu0 %v261
    %424 = vmatpush.bf16.msra.mxu0 %v253
    %425 = vmatmul.bf16.gmra.mxu0 %v279
    %v426 = vpop.f32.mrf.mxu0
    %v427 = vadd.f32 %v189, %v426
    %v428 = vpop.f32.mrf.mxu0
    %v429 = vadd.f32 %v189, %v428
    %430 = vmatmul.bf16.gmra.mxu0 %v282
    %v431 = vpop.f32.mrf.mxu0
    %v432 = vadd.f32 %v189, %v431
    %v433 = vpop.f32.mrf.mxu0
    %v434 = vadd.f32 %v189, %v433
    %435 = vdwg.mxu0
    %v436 = vpack.c.bf16 %v313, %v294
    %v437 = vpack.c.bf16 %v351, %v332
    %v438 = vpack.c.bf16 %v389, %v370
    %v439 = vpack.c.bf16 %v427, %v408
    %v440 = vpack.c.bf16 %v315, %v296
    %v441 = vpack.c.bf16 %v353, %v334
    %v442 = vpack.c.bf16 %v391, %v372
    %v443 = vpack.c.bf16 %v429, %v410
    %v444 = vpack.c.bf16 %v318, %v299
    %v445 = vpack.c.bf16 %v356, %v337
    %v446 = vpack.c.bf16 %v394, %v375
    %v447 = vpack.c.bf16 %v432, %v413
    %v448 = vpack.c.bf16 %v320, %v301
    %v449 = vpack.c.bf16 %v358, %v339
    %v450 = vpack.c.bf16 %v396, %v377
    %v451 = vpack.c.bf16 %v434, %v415
    %452 = vst [vmem:[#allocation7] sm:$0xff] %v436
    %453 = vst [vmem:[#allocation7 + $0x8] sm:$0xff] %v437
    %454 = vst [vmem:[#allocation7 + $0x10] sm:$0xff] %v438
    %455 = vst [vmem:[#allocation7 + $0x18] sm:$0xff] %v439
    %456 = vst [vmem:[#allocation7 + $0x20] sm:$0xff] %v440
    %457 = vst [vmem:[#allocation7 + $0x28] sm:$0xff] %v441
    %458 = vst [vmem:[#allocation7 + $0x30] sm:$0xff] %v442
    %459 = vst [vmem:[#allocation7 + $0x38] sm:$0xff] %v443
    %460 = vst [vmem:[#allocation7 + $0x40] sm:$0xff] %v444
    %461 = vst [vmem:[#allocation7 + $0x48] sm:$0xff] %v445
    %462 = vst [vmem:[#allocation7 + $0x50] sm:$0xff] %v446
    %463 = vst [vmem:[#allocation7 + $0x58] sm:$0xff] %v447
    %464 = vst [vmem:[#allocation7 + $0x60] sm:$0xff] %v448
    %465 = vst [vmem:[#allocation7 + $0x68] sm:$0xff] %v449
    %466 = vst [vmem:[#allocation7 + $0x70] sm:$0xff] %v450
    %467 = vst [vmem:[#allocation7 + $0x78] sm:$0xff] %v451
    // Predicated region
    $region38: #{tpu_custom_call.1} parent=1 // pred_check
      _
    $region39: #{tpu_custom_call.1} parent=1 // pred_check_branch
      %469 = sbr.rel (0) target = $region41
    $region40: #{tpu_custom_call.1} parent=1 // pred_region
      %471 = vsyncadd [#allocation4], 0
      %s472 = sshll.u32 [#allocation7], 4
      %s473 = int_to_ptr.vmem [resolvable:$true] %s472
      %s474 = sshll.u32 %s7, 4
      %s475 = int_to_ptr.hbm [resolvable:$true] %s474
      %480 = dma.vmem_to_hbm [thread:$0]  %s473, 2048, %s475, [#allocation4], 512, 512, 32
    $region41: #{tpu_custom_call.1} parent=1 // pred_fallthru
      _
    // Predicated region
    $region42: #{tpu_custom_call.1} parent=1 // pred_check
      _
    $region43: #{tpu_custom_call.1} parent=1 // pred_check_branch
      %482 = sbr.rel (0) target = $region45
    $region44: #{tpu_custom_call.1} parent=1 // pred_region
      %484 = dma.done [#allocation4], 2048
    $region45: #{tpu_custom_call.1} parent=1 // pred_fallthru
      _
    %485 = vsyncpa [#allocation3], 1
    %486 = vsyncpa [#allocation6], 1
    %487 = vsyncpa [#allocation4], 1

</llo_original>
